<compile_context>
chip_gen: v5e
topology: v5e:2x2
jax: 0.10.0
libtpu: 0.0.40
codegen_flags: <defaults>
</compile_context>

<pallas_src>
import functools

import jax
import jax.numpy as jnp
from jax.experimental import pallas as pl
from jax.experimental.pallas import tpu as pltpu


_ROW_ALIGN = 16        # bf16 sublane packing (also fine for f32)
_MAX_BLOCK_ROWS = 128  # rows per grid step


def _round_up(x, m):
    return (x + m - 1) // m * m


def _padded_rows(nc):
    if nc <= _MAX_BLOCK_ROWS:
        return _round_up(nc, _ROW_ALIGN)
    return _round_up(nc, _MAX_BLOCK_ROWS)


# --------------------------------------------------------------------------- bases
def make_dft_bases(H, W, compute_dtype):
    """Combined 2D-DFT bases over the flattened spatial index p = h*W + w.

    Returns (Bf, Bc, Bs):
      Bf: (S, 2S)  forward basis [cos | -sin] / (H*W)     =>  [G_r | G_i] = z @ Bf
      Bc: (S, S)   cos(theta)                              \
      Bs: (S, S)   sin(theta)                              /   x = X_r @ Bc - X_i @ Bs
    Built once per (H, W); cast to the matmul compute dtype (bf16 fast / f32 accurate).
    """
    S = H * W
    h = jnp.arange(H, dtype=jnp.int32)
    w = jnp.arange(W, dtype=jnp.int32)
    # integer (k*n) mod S keeps the angle exact before the 2*pi wrap
    mh = (h[:, None] * h[None, :]) % H                       # (H, H) indexed [h, u]
    mw = (w[:, None] * w[None, :]) % W                       # (W, W) indexed [w, v]
    ang = (2.0 * jnp.pi / H) * mh.astype(jnp.float32)[:, None, :, None] \
        + (2.0 * jnp.pi / W) * mw.astype(jnp.float32)[None, :, None, :]
    ang = ang.reshape(S, S)                                  # theta[(h,w), (u,v)] (symmetric)
    cos = jnp.cos(ang)
    sin = jnp.sin(ang)
    bf = jnp.concatenate([cos, -sin], axis=1) * (1.0 / S)    # 1/(H*W) folded into the forward
    return (bf.astype(compute_dtype), cos.astype(compute_dtype), sin.astype(compute_dtype))


# --------------------------------------------------------------------- operand packing
def pack_frequency_terms(FkCFy, F2k):
    """Pack the frequency-domain operands once per PnP solve (invariant across iterations).

    Returns a lane-dense f32 slab of shape (4, NC_pad, S) holding
    [FkCFy_r/(H*W), FkCFy_i/(H*W), F2k_r, F2k_i], row-padded to the block alignment.
    """
    N, C, H, W = FkCFy.shape[:4]
    S = H * W
    nc = N * C
    nc_pad = _padded_rows(nc)
    inv_s = 1.0 / S
    comp = jnp.stack(
        [FkCFy[..., 0] * inv_s, FkCFy[..., 1] * inv_s, F2k[..., 0], F2k[..., 1]],
        axis=0).astype(jnp.float32).reshape(4, nc, S)
    if nc_pad > nc:
        comp = jnp.concatenate(
            [comp, jnp.zeros((4, nc_pad - nc, S), jnp.float32)], axis=1)
    return comp


# --------------------------------------------------------------------------- kernel
def _make_kernel(S, accurate):
    precision = jax.lax.Precision.HIGHEST if accurate else None
    cdt = jnp.float32 if accurate else jnp.bfloat16

    def kernel(alpha_ref, z_ref, faux_ref, bf_ref, bc_ref, bs_ref, out_ref):
        tb = out_ref.shape[0]
        # hoist the per-row alpha broadcast: one (tb, S) slab reused below
        alpha_b = jnp.broadcast_to(alpha_ref[...], (tb, S))

        # ---- forward 2D DFT: one MXU matmul, 1/(H*W) already folded into the basis ----
        F = jnp.dot(z_ref[...], bf_ref[...],
                    preferred_element_type=jnp.float32, precision=precision)   # (tb, 2S)
        g_r = F[:, :S]          # lane-aligned static slices (S % 128 == 0): no relayout
        g_i = F[:, S:]

        # ---- Wiener filter, elementwise in f32 on lane-dense (tb, S) slabs ----
        fy_r = faux_ref[0]
        fy_i = faux_ref[1]
        f2_r = faux_ref[2]
        f2_i = faux_ref[3]
        num_r = fy_r + alpha_b * g_r            # (FkCFy + alpha * F(z)) / (H*W)
        num_i = fy_i + alpha_b * g_i
        den_r = f2_r + alpha_b                  # csum: alpha added to the real part
        den_i = f2_i
        d2 = den_r * den_r + den_i * den_i
        if accurate:
            inv = 1.0 / d2
        else:
            inv = pl.reciprocal(d2, approx=True)       # EUP slot, effectively free
        x_r = (num_r * den_r + num_i * den_i) * inv    # cdiv
        x_i = (num_i * den_r - num_r * den_i) * inv

        # ---- inverse 2D DFT (real part): two accumulated dots, no concatenate ----
        y = jnp.dot(x_r.astype(cdt), bc_ref[...],
                    preferred_element_type=jnp.float32, precision=precision)
        y = y - jnp.dot(x_i.astype(cdt), bs_ref[...],
                        preferred_element_type=jnp.float32, precision=precision)

        out_ref[...] = y.astype(out_ref.dtype)         # full-vreg (unmasked) stores

    return kernel


# ----------------------------------------------------------------------- entry points
@functools.partial(jax.jit, static_argnames=("accurate",))
def ref_deconv_packed(z, faux, alpha, bases, *, accurate=False):
    """Per-PnP-iteration RefDeconv step with pre-packed frequency operands/bases.

    z: (N, C, H, W) f32;  faux: (4, NC_pad, H*W) f32 from pack_frequency_terms;
    alpha: (N, 1);  bases: output of make_dft_bases(H, W, compute_dtype).
    """
    N, C, H, W = z.shape
    S = H * W
    assert S % 128 == 0, "H*W must be a multiple of 128"
    nc = N * C
    nc_pad = faux.shape[1]
    tb = min(nc_pad, _MAX_BLOCK_ROWS)
    cdt = jnp.float32 if accurate else jnp.bfloat16

    z_rows = z.astype(jnp.float32).reshape(nc, S).astype(cdt)
    alpha_rows = jnp.repeat(alpha.astype(jnp.float32).reshape(N, 1), C, axis=0)   # (nc, 1)
    if nc_pad > nc:
        pad = nc_pad - nc
        z_rows = jnp.concatenate([z_rows, jnp.zeros((pad, S), cdt)], axis=0)
        # padded rows: z=0, FkCFy=F2k=0, alpha=1  ->  den=1, num=0, output 0 (no div-by-0)
        alpha_rows = jnp.concatenate([alpha_rows, jnp.ones((pad, 1), jnp.float32)], axis=0)

    bf, bc, bs = bases
    kernel = _make_kernel(S, accurate)

    out = pl.pallas_call(
        kernel,
        out_shape=jax.ShapeDtypeStruct((nc_pad, S), jnp.float32),
        grid_spec=pltpu.PrefetchScalarGridSpec(
            num_scalar_prefetch=0,
            grid=(nc_pad // tb,),
            in_specs=[
                pl.BlockSpec((tb, 1), lambda i: (i, 0)),           # per-row alpha (f32)
                pl.BlockSpec((tb, S), lambda i: (i, 0)),           # z rows (compute dtype)
                pl.BlockSpec((4, tb, S), lambda i: (0, i, 0)),     # FkCFy/F2k packed (f32)
                pl.BlockSpec((S, 2 * S), lambda i: (0, 0)),        # forward basis
                pl.BlockSpec((S, S), lambda i: (0, 0)),            # inverse cos basis
                pl.BlockSpec((S, S), lambda i: (0, 0)),            # inverse sin basis
            ],
            out_specs=pl.BlockSpec((tb, S), lambda i: (i, 0)),
        ),
        compiler_params=pltpu.CompilerParams(
            dimension_semantics=("parallel",),
        ),
    )(alpha_rows, z_rows, faux, bf, bc, bs)

    return out[:nc].reshape(N, C, H, W)


def ref_deconv(z, FkCFy, F2k, alpha, *, accurate=False):
    """Convenience wrapper matching RefDeconv.forward(z, FkCFy, F2k, alpha).

    In a PnP loop, call make_dft_bases / pack_frequency_terms once and use
    ref_deconv_packed per iteration (faux is the largest operand and is invariant).
    """
    N, C, H, W = z.shape
    cdt = jnp.float32 if accurate else jnp.bfloat16
    bases = make_dft_bases(H, W, cdt)
    faux = pack_frequency_terms(FkCFy.astype(jnp.float32), F2k.astype(jnp.float32))
    return ref_deconv_packed(z.astype(jnp.float32), faux, alpha.astype(jnp.float32),
                             bases, accurate=accurate)


# ----------------------------------------------------------------------- reference
def _reference_jnp(z, FkCFy, F2k, alpha):
    """Pure-JAX reference matching torch.rfft/irfft(onesided=False) semantics."""
    Fz = jnp.fft.fft2(z.astype(jnp.float32), axes=(-2, -1))
    a = alpha[:, :, None, None]                                # (N,1,1,1) per-batch scalar
    num = (FkCFy[..., 0] + 1j * FkCFy[..., 1]) + Fz * a
    den = (F2k[..., 0] + a) + 1j * F2k[..., 1]
    X = num / den
    return jnp.real(jnp.fft.ifft2(X, axes=(-2, -1))).astype(jnp.float32)


if __name__ == "__main__":
    key = jax.random.PRNGKey(0)
    N, C, H, W = 2, 4, 16, 16
    k1, k2, k3, k4, k5 = jax.random.split(key, 5)

    z = jax.random.normal(k1, (N, C, H, W), jnp.float32)
    FkCFy = jax.random.normal(k2, (N, C, H, W, 2), jnp.float32)
    # F2k: positive real part (like |F(k)|^2) + small imaginary part so the complex
    # division denominator is well conditioned.
    f2_real = jnp.abs(jax.random.normal(k3, (N, C, H, W), jnp.float32)) + 0.5
    f2_imag = 0.1 * jax.random.normal(k4, (N, C, H, W), jnp.float32)
    F2k = jnp.stack([f2_real, f2_imag], axis=-1)
    alpha = jnp.abs(jax.random.normal(k5, (N, 1), jnp.float32)) + 0.1

    # Fast path: bf16 matmul operands + approx reciprocal.
    out = ref_deconv(z, FkCFy, F2k, alpha)
    jax.block_until_ready(out)
    assert out.shape == (N, C, H, W) and out.dtype == jnp.float32

    ref = _reference_jnp(z, FkCFy, F2k, alpha)
    err_fast = float(jnp.max(jnp.abs(out - ref)))

    # Accurate path (f32 + Precision.HIGHEST + exact reciprocal) validates the math tightly.
    out_acc = ref_deconv(z, FkCFy, F2k, alpha, accurate=True)
    jax.block_until_ready(out_acc)
    err_acc = float(jnp.max(jnp.abs(out_acc - ref)))

    assert err_acc < 2e-3, f"accurate-path mismatch vs reference: {err_acc}"
    assert err_fast < 5e-2, f"fast-path mismatch vs reference: {err_fast}"

    print("KERNEL_OK")
</pallas_src>

<mosaic_0001>
module attributes {stable_mosaic.version = 11 : i64} {
  func.func @kernel(%arg0: i32, %arg1: memref<16x1xf32, #tpu.memory_space<vmem>>, %arg2: memref<16x256xbf16, #tpu.memory_space<vmem>>, %arg3: memref<4x16x256xf32, #tpu.memory_space<vmem>>, %arg4: memref<256x512xbf16, #tpu.memory_space<vmem>>, %arg5: memref<256x256xbf16, #tpu.memory_space<vmem>>, %arg6: memref<256x256xbf16, #tpu.memory_space<vmem>>, %arg7: memref<16x256xf32, #tpu.memory_space<vmem>>) attributes {dimension_semantics = [#tpu.dimension_semantics<parallel>], iteration_bounds = array<i64: 1>, scalar_prefetch = 0 : i64, scratch_operands = 0 : i64, tpu.core_type = #tpu.core_type<tc>, window_params = [{transform_indices = @transform_0, window_bounds = array<i64: 16, 1>}, {transform_indices = @transform_1, window_bounds = array<i64: 16, 256>}, {transform_indices = @transform_2, window_bounds = array<i64: 4, 16, 256>}, {pipeline_mode = #tpu.pipeline_mode<synchronous>, transform_indices = @transform_3, window_bounds = array<i64: 256, 512>}, {pipeline_mode = #tpu.pipeline_mode<synchronous>, transform_indices = @transform_4, window_bounds = array<i64: 256, 256>}, {pipeline_mode = #tpu.pipeline_mode<synchronous>, transform_indices = @transform_5, window_bounds = array<i64: 256, 256>}, {transform_indices = @transform_6, window_bounds = array<i64: 16, 256>}]} {
    %c0 = arith.constant 0 : index
    %c0_0 = arith.constant 0 : index
    %0 = vector.load %arg1[%c0, %c0_0] : memref<16x1xf32, #tpu.memory_space<vmem>>, vector<16x1xf32>
    %1 = vector.shape_cast %0 : vector<16x1xf32> to vector<16x1xf32>
    %2 = vector.broadcast %1 : vector<16x1xf32> to vector<16x256xf32>
    %c0_1 = arith.constant 0 : index
    %c0_2 = arith.constant 0 : index
    %3 = vector.load %arg2[%c0_1, %c0_2] : memref<16x256xbf16, #tpu.memory_space<vmem>>, vector<16x256xbf16>
    %c0_3 = arith.constant 0 : index
    %c0_4 = arith.constant 0 : index
    %4 = vector.load %arg4[%c0_3, %c0_4] : memref<256x512xbf16, #tpu.memory_space<vmem>>, vector<256x512xbf16>
    %cst = arith.constant dense<0.000000e+00> : vector<16x512xf32>
    %5 = tpu.matmul %3, %4, %cst {dimension_numbers = #tpu.dot_dimension_numbers<[1], [0], [0], [1], [0, 0, 1, 1], [], []>} : vector<16x256xbf16>, vector<256x512xbf16>, vector<16x512xf32> -> vector<16x512xf32>
    %6 = vector.extract_strided_slice %5 {offsets = [0, 0], sizes = [16, 256], strides = [1, 1]} : vector<16x512xf32> to vector<16x256xf32>
    %7 = vector.extract_strided_slice %5 {offsets = [0, 256], sizes = [16, 256], strides = [1, 1]} : vector<16x512xf32> to vector<16x256xf32>
    %c0_5 = arith.constant 0 : index
    %c0_6 = arith.constant 0 : index
    %c0_7 = arith.constant 0 : index
    %8 = vector.load %arg3[%c0_5, %c0_6, %c0_7] : memref<4x16x256xf32, #tpu.memory_space<vmem>>, vector<1x16x256xf32>
    %9 = vector.shape_cast %8 : vector<1x16x256xf32> to vector<16x256xf32>
    %c1 = arith.constant 1 : index
    %c0_8 = arith.constant 0 : index
    %c0_9 = arith.constant 0 : index
    %10 = vector.load %arg3[%c1, %c0_8, %c0_9] : memref<4x16x256xf32, #tpu.memory_space<vmem>>, vector<1x16x256xf32>
    %11 = vector.shape_cast %10 : vector<1x16x256xf32> to vector<16x256xf32>
    %c2 = arith.constant 2 : index
    %c0_10 = arith.constant 0 : index
    %c0_11 = arith.constant 0 : index
    %12 = vector.load %arg3[%c2, %c0_10, %c0_11] : memref<4x16x256xf32, #tpu.memory_space<vmem>>, vector<1x16x256xf32>
    %13 = vector.shape_cast %12 : vector<1x16x256xf32> to vector<16x256xf32>
    %c3 = arith.constant 3 : index
    %c0_12 = arith.constant 0 : index
    %c0_13 = arith.constant 0 : index
    %14 = vector.load %arg3[%c3, %c0_12, %c0_13] : memref<4x16x256xf32, #tpu.memory_space<vmem>>, vector<1x16x256xf32>
    %15 = vector.shape_cast %14 : vector<1x16x256xf32> to vector<16x256xf32>
    %16 = arith.mulf %2, %6 : vector<16x256xf32>
    %17 = arith.addf %9, %16 : vector<16x256xf32>
    %18 = arith.mulf %2, %7 : vector<16x256xf32>
    %19 = arith.addf %11, %18 : vector<16x256xf32>
    %20 = arith.addf %13, %2 : vector<16x256xf32>
    %21 = arith.mulf %20, %20 : vector<16x256xf32>
    %22 = arith.mulf %15, %15 : vector<16x256xf32>
    %23 = arith.addf %21, %22 : vector<16x256xf32>
    %24 = tpu.reciprocal %23 {approx = true} : vector<16x256xf32> -> vector<16x256xf32>
    %25 = arith.mulf %17, %20 : vector<16x256xf32>
    %26 = arith.mulf %19, %15 : vector<16x256xf32>
    %27 = arith.addf %25, %26 : vector<16x256xf32>
    %28 = arith.mulf %27, %24 : vector<16x256xf32>
    %29 = arith.mulf %19, %20 : vector<16x256xf32>
    %30 = arith.mulf %17, %15 : vector<16x256xf32>
    %31 = arith.subf %29, %30 : vector<16x256xf32>
    %32 = arith.mulf %31, %24 : vector<16x256xf32>
    %33 = arith.truncf %28 : vector<16x256xf32> to vector<16x256xbf16>
    %c0_14 = arith.constant 0 : index
    %c0_15 = arith.constant 0 : index
    %34 = vector.load %arg5[%c0_14, %c0_15] : memref<256x256xbf16, #tpu.memory_space<vmem>>, vector<256x256xbf16>
    %cst_16 = arith.constant dense<0.000000e+00> : vector<16x256xf32>
    %35 = tpu.matmul %33, %34, %cst_16 {dimension_numbers = #tpu.dot_dimension_numbers<[1], [0], [0], [1], [0, 0, 1, 1], [], []>} : vector<16x256xbf16>, vector<256x256xbf16>, vector<16x256xf32> -> vector<16x256xf32>
    %36 = arith.truncf %32 : vector<16x256xf32> to vector<16x256xbf16>
    %c0_17 = arith.constant 0 : index
    %c0_18 = arith.constant 0 : index
    %37 = vector.load %arg6[%c0_17, %c0_18] : memref<256x256xbf16, #tpu.memory_space<vmem>>, vector<256x256xbf16>
    %cst_19 = arith.constant dense<0.000000e+00> : vector<16x256xf32>
    %38 = tpu.matmul %36, %37, %cst_19 {dimension_numbers = #tpu.dot_dimension_numbers<[1], [0], [0], [1], [0, 0, 1, 1], [], []>} : vector<16x256xbf16>, vector<256x256xbf16>, vector<16x256xf32> -> vector<16x256xf32>
    %39 = arith.subf %35, %38 : vector<16x256xf32>
    %c0_20 = arith.constant 0 : index
    %c0_21 = arith.constant 0 : index
    %40 = vector.load %arg7[%c0_20, %c0_21] : memref<16x256xf32, #tpu.memory_space<vmem>>, vector<16x256xf32>
    tpu.vector_store %arg7[%c0_20, %c0_21], %39 {strides = array<i32>} : memref<16x256xf32, #tpu.memory_space<vmem>>, vector<16x256xf32>,
    return
  }
  func.func @transform_0(%arg0: i32) -> (i32, i32) {
    %c0_i32 = arith.constant 0 : i32
    %c0_i32_0 = arith.constant 0 : i32
    return %arg0, %c0_i32 : i32, i32
  }
  func.func @transform_1(%arg0: i32) -> (i32, i32) {
    %c0_i32 = arith.constant 0 : i32
    %c0_i32_0 = arith.constant 0 : i32
    return %arg0, %c0_i32 : i32, i32
  }
  func.func @transform_2(%arg0: i32) -> (i32, i32, i32) {
    %c0_i32 = arith.constant 0 : i32
    %c0_i32_0 = arith.constant 0 : i32
    %c0_i32_1 = arith.constant 0 : i32
    return %c0_i32, %arg0, %c0_i32_0 : i32, i32, i32
  }
  func.func @transform_3(%arg0: i32) -> (i32, i32) {
    %c0_i32 = arith.constant 0 : i32
    %c0_i32_0 = arith.constant 0 : i32
    %c0_i32_1 = arith.constant 0 : i32
    return %c0_i32, %c0_i32_0 : i32, i32
  }
  func.func @transform_4(%arg0: i32) -> (i32, i32) {
    %c0_i32 = arith.constant 0 : i32
    %c0_i32_0 = arith.constant 0 : i32
    %c0_i32_1 = arith.constant 0 : i32
    return %c0_i32, %c0_i32_0 : i32, i32
  }
  func.func @transform_5(%arg0: i32) -> (i32, i32) {
    %c0_i32 = arith.constant 0 : i32
    %c0_i32_0 = arith.constant 0 : i32
    %c0_i32_1 = arith.constant 0 : i32
    return %c0_i32, %c0_i32_0 : i32, i32
  }
  func.func @transform_6(%arg0: i32) -> (i32, i32) {
    %c0_i32 = arith.constant 0 : i32
    %c0_i32_0 = arith.constant 0 : i32
    return %arg0, %c0_i32 : i32, i32
  }
}

</mosaic_0001>

<llo_original>
// kernel: ref_deconv_packed.1
$region0: #{ref_deconv_packed.1}
  #allocation0 [shape = 'u32[]', space=smem, size = 0x4, offset = 0x4, fixed_abs, tag = 'smem constant byte address 0x4 - core index']
  #allocation1 [shape = 'u32[72,128]{1,0:T(1,128)}', space=vmem, size = 0x9000, scoped, tag = 'internal scratch']
  %s0 = inlined_call_operand.vmem [shape: f32[16,1], index: 0, kind: input, shape index: {}]
  %s1 = inlined_call_operand.vmem [shape: bf16[16,256], index: 1, kind: input, shape index: {}]
  %s2 = inlined_call_operand.hbm [shape: f32[4,16,256], index: 2, kind: input, shape index: {}]
  %s3 = inlined_call_operand.hbm [shape: bf16[256,512], index: 3, kind: input, shape index: {}]
  %s4 = inlined_call_operand.vmem [shape: bf16[256,256], index: 4, kind: input, shape index: {}]
  %s5 = inlined_call_operand.hbm [shape: bf16[256,256], index: 5, kind: input, shape index: {}]
  %s6 = inlined_call_operand.vmem [shape: f32[16,256], index: 6, kind: output, shape index: {}]
  %s7 = sld [smem:[#allocation0]]
  $region46: #{ref_deconv_packed.1} parent=0
    _
  %s9 = ssub.s32 1, %s7
  %s10 = scalar_select 0, %s9, %s7
  $region1: #{ref_deconv_packed.1} parent=0
    #allocation2 [shape = 'u8[65536]{0}', space=vmem, size = 0x10000, scoped, tag = 'input window, operand 2, single buffered']
    #allocation3 [shape = 's32[1]{0}', space=sflag, size = 0x4, scoped, tag = 'scoped memory for ref_deconv_packed.1']
    #allocation4 [shape = 'u8[262144]{0}', space=vmem, size = 0x40000, scoped, tag = 'input window, operand 3, single buffered']
    #allocation5 [shape = 's32[1]{0}', space=sflag, size = 0x4, scoped, tag = 'scoped memory for ref_deconv_packed.1']
    #allocation6 [shape = 'u8[131072]{0}', space=vmem, size = 0x20000, scoped, tag = 'input window, operand 5, single buffered']
    %11 = vsyncpa [#allocation3], 0
    %12 = vsyncpa [#allocation5], 0
    // Predicated region
    $region2: #{ref_deconv_packed.1} parent=1 // pred_check
      _
    $region3: #{ref_deconv_packed.1} parent=1 // pred_check_branch
      %14 = sbr.rel (0) target = $region5
    $region4: #{ref_deconv_packed.1} parent=1 // pred_region
      _
    $region5: #{ref_deconv_packed.1} parent=1 // pred_fallthru
      _
    // Predicated region
    $region6: #{ref_deconv_packed.1} parent=1 // pred_check
      _
    $region7: #{ref_deconv_packed.1} parent=1 // pred_check_branch
      %16 = sbr.rel (0) target = $region9
    $region8: #{ref_deconv_packed.1} parent=1 // pred_region
      _
    $region9: #{ref_deconv_packed.1} parent=1 // pred_fallthru
      _
    // Predicated region
    $region10: #{ref_deconv_packed.1} parent=1 // pred_check
      _
    $region11: #{ref_deconv_packed.1} parent=1 // pred_check_branch
      %18 = sbr.rel (0) target = $region13
    $region12: #{ref_deconv_packed.1} parent=1 // pred_region
      %20 = vsyncadd [#allocation3], 0
      %s21 = sshll.u32 %s2, 4
      %s22 = int_to_ptr.hbm [resolvable:$true] %s21
      %s23 = sshll.u32 [#allocation2], 4
      %s24 = int_to_ptr.vmem [resolvable:$true] %s23
      %29 = dma.hbm_to_vmem [thread:$0]  %s22, 2048, %s24, [#allocation3], 256, 256, 16
    $region13: #{ref_deconv_packed.1} parent=1 // pred_fallthru
      _
    // Predicated region
    $region14: #{ref_deconv_packed.1} parent=1 // pred_check
      _
    $region15: #{ref_deconv_packed.1} parent=1 // pred_check_branch
      %31 = sbr.rel (0) target = $region17
    $region16: #{ref_deconv_packed.1} parent=1 // pred_region
      %33 = vsyncadd [#allocation5], 0
      %s34 = sshll.u32 %s3, 4
      %s35 = int_to_ptr.hbm [resolvable:$true] %s34
      %s36 = sshll.u32 [#allocation4], 4
      %s37 = int_to_ptr.vmem [resolvable:$true] %s36
      %42 = dma.hbm_to_vmem [thread:$0]  %s35, 8192, %s37, [#allocation5], 256, 256, 16
    $region17: #{ref_deconv_packed.1} parent=1 // pred_fallthru
      _
    // Predicated region
    $region18: #{ref_deconv_packed.1} parent=1 // pred_check
      _
    $region19: #{ref_deconv_packed.1} parent=1 // pred_check_branch
      %44 = sbr.rel (0) target = $region21
    $region20: #{ref_deconv_packed.1} parent=1 // pred_region
      _
    $region21: #{ref_deconv_packed.1} parent=1 // pred_fallthru
      _
    // Predicated region
    $region22: #{ref_deconv_packed.1} parent=1 // pred_check
      _
    $region23: #{ref_deconv_packed.1} parent=1 // pred_check_branch
      %46 = sbr.rel (0) target = $region25
    $region24: #{ref_deconv_packed.1} parent=1 // pred_region
      %48 = vsyncadd [#allocation5], 0
      %s49 = sshll.u32 %s5, 4
      %s50 = int_to_ptr.hbm [resolvable:$true] %s49
      %s51 = sshll.u32 [#allocation6], 4
      %s52 = int_to_ptr.vmem [resolvable:$true] %s51
      %57 = dma.hbm_to_vmem [thread:$0]  %s50, 4096, %s52, [#allocation5], 128, 128, 8
    $region25: #{ref_deconv_packed.1} parent=1 // pred_fallthru
      _
    // Predicated region
    $region26: #{ref_deconv_packed.1} parent=1 // pred_check
      _
    $region27: #{ref_deconv_packed.1} parent=1 // pred_check_branch
      %59 = sbr.rel (0) target = $region29
    $region28: #{ref_deconv_packed.1} parent=1 // pred_region
      %61 = dma.done [#allocation3], 2048
    $region29: #{ref_deconv_packed.1} parent=1 // pred_fallthru
      _
    // Predicated region
    $region30: #{ref_deconv_packed.1} parent=1 // pred_check
      _
    $region31: #{ref_deconv_packed.1} parent=1 // pred_check_branch
      %63 = sbr.rel (0) target = $region33
    $region32: #{ref_deconv_packed.1} parent=1 // pred_region
      %65 = dma.done [#allocation5], 8192
    $region33: #{ref_deconv_packed.1} parent=1 // pred_fallthru
      _
    // Predicated region
    $region34: #{ref_deconv_packed.1} parent=1 // pred_check
      _
    $region35: #{ref_deconv_packed.1} parent=1 // pred_check_branch
      %67 = sbr.rel (0) target = $region37
    $region36: #{ref_deconv_packed.1} parent=1 // pred_region
      %69 = dma.done [#allocation5], 4096
    $region37: #{ref_deconv_packed.1} parent=1 // pred_fallthru
      _
    %v70 = vld [vmem:[%s0] sm:$0xff]
    %v71 = vld [vmem:[%s0 + $0x8] sm:$0xff]
    %73 = vset.pattern.permute.xlu0 0
    %74 = vperm.xlu0 %73, %v70
    %v75 = vpop.permute.xlu0 %74
    %78 = vset.pattern.permute.xlu0 0
    %79 = vperm.xlu0 %78, %v71
    %v80 = vpop.permute.xlu0 %79
    %v82 = vld [vmem:[%s1] sm:$0xff]
    %v83 = vld [vmem:[%s1 + $0x8] sm:$0xff]
    %v84 = vld [vmem:[#allocation4] sm:$0xff]
    %v85 = vld [vmem:[#allocation4 + $0x8] sm:$0xff]
    %v86 = vld [vmem:[#allocation4 + $0x10] sm:$0xff]
    %v87 = vld [vmem:[#allocation4 + $0x18] sm:$0xff]
    %v88 = vld [vmem:[#allocation4 + $0x20] sm:$0xff]
    %v89 = vld [vmem:[#allocation4 + $0x28] sm:$0xff]
    %v90 = vld [vmem:[#allocation4 + $0x30] sm:$0xff]
    %v91 = vld [vmem:[#allocation4 + $0x38] sm:$0xff]
    %v92 = vld [vmem:[#allocation4 + $0x40] sm:$0xff]
    %v93 = vld [vmem:[#allocation4 + $0x48] sm:$0xff]
    %v94 = vld [vmem:[#allocation4 + $0x50] sm:$0xff]
    %v95 = vld [vmem:[#allocation4 + $0x58] sm:$0xff]
    %v96 = vld [vmem:[#allocation4 + $0x60] sm:$0xff]
    %v97 = vld [vmem:[#allocation4 + $0x68] sm:$0xff]
    %v98 = vld [vmem:[#allocation4 + $0x70] sm:$0xff]
    %v99 = vld [vmem:[#allocation4 + $0x78] sm:$0xff]
    %v100 = vld [vmem:[#allocation4 + $0x80] sm:$0xff]
    %v101 = vld [vmem:[#allocation4 + $0x88] sm:$0xff]
    %v102 = vld [vmem:[#allocation4 + $0x90] sm:$0xff]
    %v103 = vld [vmem:[#allocation4 + $0x98] sm:$0xff]
    %v104 = vld [vmem:[#allocation4 + $0xa0] sm:$0xff]
    %v105 = vld [vmem:[#allocation4 + $0xa8] sm:$0xff]
    %v106 = vld [vmem:[#allocation4 + $0xb0] sm:$0xff]
    %v107 = vld [vmem:[#allocation4 + $0xb8] sm:$0xff]
    %v108 = vld [vmem:[#allocation4 + $0xc0] sm:$0xff]
    %v109 = vld [vmem:[#allocation4 + $0xc8] sm:$0xff]
    %v110 = vld [vmem:[#allocation4 + $0xd0] sm:$0xff]
    %v111 = vld [vmem:[#allocation4 + $0xd8] sm:$0xff]
    %v112 = vld [vmem:[#allocation4 + $0xe0] sm:$0xff]
    %v113 = vld [vmem:[#allocation4 + $0xe8] sm:$0xff]
    %v114 = vld [vmem:[#allocation4 + $0xf0] sm:$0xff]
    %v115 = vld [vmem:[#allocation4 + $0xf8] sm:$0xff]
    %v116 = vld [vmem:[#allocation4 + $0x100] sm:$0xff]
    %v117 = vld [vmem:[#allocation4 + $0x108] sm:$0xff]
    %v118 = vld [vmem:[#allocation4 + $0x110] sm:$0xff]
    %v119 = vld [vmem:[#allocation4 + $0x118] sm:$0xff]
    %v120 = vld [vmem:[#allocation4 + $0x120] sm:$0xff]
    %v121 = vld [vmem:[#allocation4 + $0x128] sm:$0xff]
    %v122 = vld [vmem:[#allocation4 + $0x130] sm:$0xff]
    %v123 = vld [vmem:[#allocation4 + $0x138] sm:$0xff]
    %v124 = vld [vmem:[#allocation4 + $0x140] sm:$0xff]
    %v125 = vld [vmem:[#allocation4 + $0x148] sm:$0xff]
    %v126 = vld [vmem:[#allocation4 + $0x150] sm:$0xff]
    %v127 = vld [vmem:[#allocation4 + $0x158] sm:$0xff]
    %v128 = vld [vmem:[#allocation4 + $0x160] sm:$0xff]
    %v129 = vld [vmem:[#allocation4 + $0x168] sm:$0xff]
    %v130 = vld [vmem:[#allocation4 + $0x170] sm:$0xff]
    %v131 = vld [vmem:[#allocation4 + $0x178] sm:$0xff]
    %v132 = vld [vmem:[#allocation4 + $0x180] sm:$0xff]
    %v133 = vld [vmem:[#allocation4 + $0x188] sm:$0xff]
    %v134 = vld [vmem:[#allocation4 + $0x190] sm:$0xff]
    %v135 = vld [vmem:[#allocation4 + $0x198] sm:$0xff]
    %v136 = vld [vmem:[#allocation4 + $0x1a0] sm:$0xff]
    %v137 = vld [vmem:[#allocation4 + $0x1a8] sm:$0xff]
    %v138 = vld [vmem:[#allocation4 + $0x1b0] sm:$0xff]
    %v139 = vld [vmem:[#allocation4 + $0x1b8] sm:$0xff]
    %v140 = vld [vmem:[#allocation4 + $0x1c0] sm:$0xff]
    %v141 = vld [vmem:[#allocation4 + $0x1c8] sm:$0xff]
    %v142 = vld [vmem:[#allocation4 + $0x1d0] sm:$0xff]
    %v143 = vld [vmem:[#allocation4 + $0x1d8] sm:$0xff]
    %v144 = vld [vmem:[#allocation4 + $0x1e0] sm:$0xff]
    %v145 = vld [vmem:[#allocation4 + $0x1e8] sm:$0xff]
    %v146 = vld [vmem:[#allocation4 + $0x1f0] sm:$0xff]
    %v147 = vld [vmem:[#allocation4 + $0x1f8] sm:$0xff]
    %v150 = vunpack.c.l.b16 %v82
    %v151 = vunpack.c.h.b16 %v82
    %v152 = vunpack.c.l.b16 %v83
    %v153 = vunpack.c.h.b16 %v83
    %v154 = vpack.c.b16 %v152, %v150
    %v155 = vpack.c.b16 %v153, %v151
    %v222 = vunpack.c.l.b16 %v84
    %v223 = vunpack.c.h.b16 %v84
    %v224 = vunpack.c.l.b16 %v85
    %v225 = vunpack.c.h.b16 %v85
    %v226 = vunpack.c.l.b16 %v86
    %v227 = vunpack.c.h.b16 %v86
    %v228 = vunpack.c.l.b16 %v87
    %v229 = vunpack.c.h.b16 %v87
    %v230 = vunpack.c.l.b16 %v88
    %v231 = vunpack.c.h.b16 %v88
    %v232 = vunpack.c.l.b16 %v89
    %v233 = vunpack.c.h.b16 %v89
    %v234 = vunpack.c.l.b16 %v90
    %v235 = vunpack.c.h.b16 %v90
    %v236 = vunpack.c.l.b16 %v91
    %v237 = vunpack.c.h.b16 %v91
    %v238 = vunpack.c.l.b16 %v92
    %v239 = vunpack.c.h.b16 %v92
    %v240 = vunpack.c.l.b16 %v93
    %v241 = vunpack.c.h.b16 %v93
    %v242 = vunpack.c.l.b16 %v94
    %v243 = vunpack.c.h.b16 %v94
    %v244 = vunpack.c.l.b16 %v95
    %v245 = vunpack.c.h.b16 %v95
    %v246 = vunpack.c.l.b16 %v96
    %v247 = vunpack.c.h.b16 %v96
    %v248 = vunpack.c.l.b16 %v97
    %v249 = vunpack.c.h.b16 %v97
    %v250 = vunpack.c.l.b16 %v98
    %v251 = vunpack.c.h.b16 %v98
    %v252 = vunpack.c.l.b16 %v99
    %v253 = vunpack.c.h.b16 %v99
    %v254 = vunpack.c.l.b16 %v100
    %v255 = vunpack.c.h.b16 %v100
    %v256 = vunpack.c.l.b16 %v101
    %v257 = vunpack.c.h.b16 %v101
    %v258 = vunpack.c.l.b16 %v102
    %v259 = vunpack.c.h.b16 %v102
    %v260 = vunpack.c.l.b16 %v103
    %v261 = vunpack.c.h.b16 %v103
    %v262 = vunpack.c.l.b16 %v104
    %v263 = vunpack.c.h.b16 %v104
    %v264 = vunpack.c.l.b16 %v105
    %v265 = vunpack.c.h.b16 %v105
    %v266 = vunpack.c.l.b16 %v106
    %v267 = vunpack.c.h.b16 %v106
    %v268 = vunpack.c.l.b16 %v107
    %v269 = vunpack.c.h.b16 %v107
    %v270 = vunpack.c.l.b16 %v108
    %v271 = vunpack.c.h.b16 %v108
    %v272 = vunpack.c.l.b16 %v109
    %v273 = vunpack.c.h.b16 %v109
    %v274 = vunpack.c.l.b16 %v110
    %v275 = vunpack.c.h.b16 %v110
    %v276 = vunpack.c.l.b16 %v111
    %v277 = vunpack.c.h.b16 %v111
    %v278 = vunpack.c.l.b16 %v112
    %v279 = vunpack.c.h.b16 %v112
    %v280 = vunpack.c.l.b16 %v113
    %v281 = vunpack.c.h.b16 %v113
    %v282 = vunpack.c.l.b16 %v114
    %v283 = vunpack.c.h.b16 %v114
    %v284 = vunpack.c.l.b16 %v115
    %v285 = vunpack.c.h.b16 %v115
    %v286 = vunpack.c.l.b16 %v116
    %v287 = vunpack.c.h.b16 %v116
    %v288 = vunpack.c.l.b16 %v117
    %v289 = vunpack.c.h.b16 %v117
    %v290 = vunpack.c.l.b16 %v118
    %v291 = vunpack.c.h.b16 %v118
    %v292 = vunpack.c.l.b16 %v119
    %v293 = vunpack.c.h.b16 %v119
    %v294 = vunpack.c.l.b16 %v120
    %v295 = vunpack.c.h.b16 %v120
    %v296 = vunpack.c.l.b16 %v121
    %v297 = vunpack.c.h.b16 %v121
    %v298 = vunpack.c.l.b16 %v122
    %v299 = vunpack.c.h.b16 %v122
    %v300 = vunpack.c.l.b16 %v123
    %v301 = vunpack.c.h.b16 %v123
    %v302 = vunpack.c.l.b16 %v124
    %v303 = vunpack.c.h.b16 %v124
    %v304 = vunpack.c.l.b16 %v125
    %v305 = vunpack.c.h.b16 %v125
    %v306 = vunpack.c.l.b16 %v126
    %v307 = vunpack.c.h.b16 %v126
    %v308 = vunpack.c.l.b16 %v127
    %v309 = vunpack.c.h.b16 %v127
    %v310 = vunpack.c.l.b16 %v128
    %v311 = vunpack.c.h.b16 %v128
    %v312 = vunpack.c.l.b16 %v129
    %v313 = vunpack.c.h.b16 %v129
    %v314 = vunpack.c.l.b16 %v130
    %v315 = vunpack.c.h.b16 %v130
    %v316 = vunpack.c.l.b16 %v131
    %v317 = vunpack.c.h.b16 %v131
    %v318 = vunpack.c.l.b16 %v132
    %v319 = vunpack.c.h.b16 %v132
    %v320 = vunpack.c.l.b16 %v133
    %v321 = vunpack.c.h.b16 %v133
    %v322 = vunpack.c.l.b16 %v134
    %v323 = vunpack.c.h.b16 %v134
    %v324 = vunpack.c.l.b16 %v135
    %v325 = vunpack.c.h.b16 %v135
    %v326 = vunpack.c.l.b16 %v136
    %v327 = vunpack.c.h.b16 %v136
    %v328 = vunpack.c.l.b16 %v137
    %v329 = vunpack.c.h.b16 %v137
    %v330 = vunpack.c.l.b16 %v138
    %v331 = vunpack.c.h.b16 %v138
    %v332 = vunpack.c.l.b16 %v139
    %v333 = vunpack.c.h.b16 %v139
    %v334 = vunpack.c.l.b16 %v140
    %v335 = vunpack.c.h.b16 %v140
    %v336 = vunpack.c.l.b16 %v141
    %v337 = vunpack.c.h.b16 %v141
    %v338 = vunpack.c.l.b16 %v142
    %v339 = vunpack.c.h.b16 %v142
    %v340 = vunpack.c.l.b16 %v143
    %v341 = vunpack.c.h.b16 %v143
    %v342 = vunpack.c.l.b16 %v144
    %v343 = vunpack.c.h.b16 %v144
    %v344 = vunpack.c.l.b16 %v145
    %v345 = vunpack.c.h.b16 %v145
    %v346 = vunpack.c.l.b16 %v146
    %v347 = vunpack.c.h.b16 %v146
    %v348 = vunpack.c.l.b16 %v147
    %v349 = vunpack.c.h.b16 %v147
    %v350 = vpack.c.b16 %v226, %v222
    %v351 = vpack.c.b16 %v227, %v223
    %v352 = vpack.c.b16 %v228, %v224
    %v353 = vpack.c.b16 %v229, %v225
    %v354 = vpack.c.b16 %v234, %v230
    %v355 = vpack.c.b16 %v235, %v231
    %v356 = vpack.c.b16 %v236, %v232
    %v357 = vpack.c.b16 %v237, %v233
    %v358 = vpack.c.b16 %v242, %v238
    %v359 = vpack.c.b16 %v243, %v239
    %v360 = vpack.c.b16 %v244, %v240
    %v361 = vpack.c.b16 %v245, %v241
    %v362 = vpack.c.b16 %v250, %v246
    %v363 = vpack.c.b16 %v251, %v247
    %v364 = vpack.c.b16 %v252, %v248
    %v365 = vpack.c.b16 %v253, %v249
    %v366 = vpack.c.b16 %v258, %v254
    %v367 = vpack.c.b16 %v259, %v255
    %v368 = vpack.c.b16 %v260, %v256
    %v369 = vpack.c.b16 %v261, %v257
    %v370 = vpack.c.b16 %v266, %v262
    %v371 = vpack.c.b16 %v267, %v263
    %v372 = vpack.c.b16 %v268, %v264
    %v373 = vpack.c.b16 %v269, %v265
    %v374 = vpack.c.b16 %v274, %v270
    %v375 = vpack.c.b16 %v275, %v271
    %v376 = vpack.c.b16 %v276, %v272
    %v377 = vpack.c.b16 %v277, %v273
    %v378 = vpack.c.b16 %v282, %v278
    %v379 = vpack.c.b16 %v283, %v279
    %v380 = vpack.c.b16 %v284, %v280
    %v381 = vpack.c.b16 %v285, %v281
    %v382 = vpack.c.b16 %v290, %v286
    %v383 = vpack.c.b16 %v291, %v287
    %v384 = vpack.c.b16 %v292, %v288
    %v385 = vpack.c.b16 %v293, %v289
    %v386 = vpack.c.b16 %v298, %v294
    %v387 = vpack.c.b16 %v299, %v295
    %v388 = vpack.c.b16 %v300, %v296
    %v389 = vpack.c.b16 %v301, %v297
    %v390 = vpack.c.b16 %v306, %v302
    %v391 = vpack.c.b16 %v307, %v303
    %v392 = vpack.c.b16 %v308, %v304
    %v393 = vpack.c.b16 %v309, %v305
    %v394 = vpack.c.b16 %v314, %v310
    %v395 = vpack.c.b16 %v315, %v311
    %v396 = vpack.c.b16 %v316, %v312
    %v397 = vpack.c.b16 %v317, %v313
    %v398 = vpack.c.b16 %v322, %v318
    %v399 = vpack.c.b16 %v323, %v319
    %v400 = vpack.c.b16 %v324, %v320
    %v401 = vpack.c.b16 %v325, %v321
    %v402 = vpack.c.b16 %v330, %v326
    %v403 = vpack.c.b16 %v331, %v327
    %v404 = vpack.c.b16 %v332, %v328
    %v405 = vpack.c.b16 %v333, %v329
    %v406 = vpack.c.b16 %v338, %v334
    %v407 = vpack.c.b16 %v339, %v335
    %v408 = vpack.c.b16 %v340, %v336
    %v409 = vpack.c.b16 %v341, %v337
    %v410 = vpack.c.b16 %v346, %v342
    %v411 = vpack.c.b16 %v347, %v343
    %v412 = vpack.c.b16 %v348, %v344
    %v413 = vpack.c.b16 %v349, %v345
    %478 = vmatpush.bf16.msra.mxu0 %v378
    %479 = vmatpush.bf16.msra.mxu0 %v374
    %480 = vmatpush.bf16.msra.mxu0 %v370
    %481 = vmatpush.bf16.msra.mxu0 %v366
    %482 = vmatpush.bf16.msra.mxu0 %v362
    %483 = vmatpush.bf16.msra.mxu0 %v358
    %484 = vmatpush.bf16.msra.mxu0 %v354
    %485 = vmatpush.bf16.msra.mxu0 %v350
    %486 = vmatmul.bf16.gmra.mxu0 %v154
    %v487 = vpop.f32.mrf.mxu0
    %v488 = vadd.f32 0.0, %v487
    %v489 = vpop.f32.mrf.mxu0
    %v490 = vadd.f32 0.0, %v489
    %491 = vdwg.mxu0
    %492 = vmatpush.bf16.msra.mxu0 %v410
    %493 = vmatpush.bf16.msra.mxu0 %v406
    %494 = vmatpush.bf16.msra.mxu0 %v402
    %495 = vmatpush.bf16.msra.mxu0 %v398
    %496 = vmatpush.bf16.msra.mxu0 %v394
    %497 = vmatpush.bf16.msra.mxu0 %v390
    %498 = vmatpush.bf16.msra.mxu0 %v386
    %499 = vmatpush.bf16.msra.mxu0 %v382
    %500 = vmatmul.bf16.gmra.mxu0 %v155
    %v501 = vpop.f32.mrf.mxu0
    %v502 = vadd.f32 %v488, %v501
    %v503 = vpop.f32.mrf.mxu0
    %v504 = vadd.f32 %v490, %v503
    %505 = vdwg.mxu0
    %506 = vmatpush.bf16.msra.mxu0 %v379
    %507 = vmatpush.bf16.msra.mxu0 %v375
    %508 = vmatpush.bf16.msra.mxu0 %v371
    %509 = vmatpush.bf16.msra.mxu0 %v367
    %510 = vmatpush.bf16.msra.mxu0 %v363
    %511 = vmatpush.bf16.msra.mxu0 %v359
    %512 = vmatpush.bf16.msra.mxu0 %v355
    %513 = vmatpush.bf16.msra.mxu0 %v351
    %514 = vmatmul.bf16.gmra.mxu0 %v154
    %v515 = vpop.f32.mrf.mxu0
    %v516 = vadd.f32 0.0, %v515
    %v517 = vpop.f32.mrf.mxu0
    %v518 = vadd.f32 0.0, %v517
    %519 = vdwg.mxu0
    %520 = vmatpush.bf16.msra.mxu0 %v411
    %521 = vmatpush.bf16.msra.mxu0 %v407
    %522 = vmatpush.bf16.msra.mxu0 %v403
    %523 = vmatpush.bf16.msra.mxu0 %v399
    %524 = vmatpush.bf16.msra.mxu0 %v395
    %525 = vmatpush.bf16.msra.mxu0 %v391
    %526 = vmatpush.bf16.msra.mxu0 %v387
    %527 = vmatpush.bf16.msra.mxu0 %v383
    %528 = vmatmul.bf16.gmra.mxu0 %v155
    %v529 = vpop.f32.mrf.mxu0
    %v530 = vadd.f32 %v516, %v529
    %v531 = vpop.f32.mrf.mxu0
    %v532 = vadd.f32 %v518, %v531
    %533 = vdwg.mxu0
    %534 = vmatpush.bf16.msra.mxu0 %v380
    %535 = vmatpush.bf16.msra.mxu0 %v376
    %536 = vmatpush.bf16.msra.mxu0 %v372
    %537 = vmatpush.bf16.msra.mxu0 %v368
    %538 = vmatpush.bf16.msra.mxu0 %v364
    %539 = vmatpush.bf16.msra.mxu0 %v360
    %540 = vmatpush.bf16.msra.mxu0 %v356
    %541 = vmatpush.bf16.msra.mxu0 %v352
    %542 = vmatmul.bf16.gmra.mxu0 %v154
    %v543 = vpop.f32.mrf.mxu0
    %v544 = vadd.f32 0.0, %v543
    %v545 = vpop.f32.mrf.mxu0
    %v546 = vadd.f32 0.0, %v545
    %547 = vdwg.mxu0
    %548 = vmatpush.bf16.msra.mxu0 %v412
    %549 = vmatpush.bf16.msra.mxu0 %v408
    %550 = vmatpush.bf16.msra.mxu0 %v404
    %551 = vmatpush.bf16.msra.mxu0 %v400
    %552 = vmatpush.bf16.msra.mxu0 %v396
    %553 = vmatpush.bf16.msra.mxu0 %v392
    %554 = vmatpush.bf16.msra.mxu0 %v388
    %555 = vmatpush.bf16.msra.mxu0 %v384
    %556 = vmatmul.bf16.gmra.mxu0 %v155
    %v557 = vpop.f32.mrf.mxu0
    %v558 = vadd.f32 %v544, %v557
    %v559 = vpop.f32.mrf.mxu0
    %v560 = vadd.f32 %v546, %v559
    %561 = vdwg.mxu0
    %562 = vmatpush.bf16.msra.mxu0 %v381
    %563 = vmatpush.bf16.msra.mxu0 %v377
    %564 = vmatpush.bf16.msra.mxu0 %v373
    %565 = vmatpush.bf16.msra.mxu0 %v369
    %566 = vmatpush.bf16.msra.mxu0 %v365
    %567 = vmatpush.bf16.msra.mxu0 %v361
    %568 = vmatpush.bf16.msra.mxu0 %v357
    %569 = vmatpush.bf16.msra.mxu0 %v353
    %570 = vmatmul.bf16.gmra.mxu0 %v154
    %v571 = vpop.f32.mrf.mxu0
    %v572 = vadd.f32 0.0, %v571
    %v573 = vpop.f32.mrf.mxu0
    %v574 = vadd.f32 0.0, %v573
    %575 = vdwg.mxu0
    %576 = vmatpush.bf16.msra.mxu0 %v413
    %577 = vmatpush.bf16.msra.mxu0 %v409
    %578 = vmatpush.bf16.msra.mxu0 %v405
    %579 = vmatpush.bf16.msra.mxu0 %v401
    %580 = vmatpush.bf16.msra.mxu0 %v397
    %581 = vmatpush.bf16.msra.mxu0 %v393
    %582 = vmatpush.bf16.msra.mxu0 %v389
    %583 = vmatpush.bf16.msra.mxu0 %v385
    %584 = vmatmul.bf16.gmra.mxu0 %v155
    %v585 = vpop.f32.mrf.mxu0
    %v586 = vadd.f32 %v572, %v585
    %v587 = vpop.f32.mrf.mxu0
    %v588 = vadd.f32 %v574, %v587
    %589 = vdwg.mxu0
    %v590 = vld [vmem:[#allocation2] sm:$0xff]
    %v591 = vld [vmem:[#allocation2 + $0x8] sm:$0xff]
    %v592 = vld [vmem:[#allocation2 + $0x10] sm:$0xff]
    %v593 = vld [vmem:[#allocation2 + $0x18] sm:$0xff]
    %s594 = scalar_lea.vmem [#allocation2], 32
    %v595 = vld [vmem:[%s594] sm:$0xff]
    %v596 = vld [vmem:[%s594 + $0x8] sm:$0xff]
    %v597 = vld [vmem:[%s594 + $0x10] sm:$0xff]
    %v598 = vld [vmem:[%s594 + $0x18] sm:$0xff]
    %s599 = scalar_lea.vmem [#allocation2], 64
    %v600 = vld [vmem:[%s599] sm:$0xff]
    %v601 = vld [vmem:[%s599 + $0x8] sm:$0xff]
    %v602 = vld [vmem:[%s599 + $0x10] sm:$0xff]
    %v603 = vld [vmem:[%s599 + $0x18] sm:$0xff]
    %s604 = scalar_lea.vmem [#allocation2], 96
    %v605 = vld [vmem:[%s604] sm:$0xff]
    %v606 = vld [vmem:[%s604 + $0x8] sm:$0xff]
    %v607 = vld [vmem:[%s604 + $0x10] sm:$0xff]
    %v608 = vld [vmem:[%s604 + $0x18] sm:$0xff]
    %v609 = vmul.f32 %v75, %v502
    %v610 = vmul.f32 %v75, %v530
    %v611 = vmul.f32 %v80, %v504
    %v612 = vmul.f32 %v80, %v532
    %v613 = vadd.f32 %v590, %v609
    %v614 = vadd.f32 %v591, %v610
    %v615 = vadd.f32 %v592, %v611
    %v616 = vadd.f32 %v593, %v612
    %v617 = vmul.f32 %v75, %v558
    %v618 = vmul.f32 %v75, %v586
    %v619 = vmul.f32 %v80, %v560
    %v620 = vmul.f32 %v80, %v588
    %v621 = vadd.f32 %v595, %v617
    %v622 = vadd.f32 %v596, %v618
    %v623 = vadd.f32 %v597, %v619
    %v624 = vadd.f32 %v598, %v620
    %v625 = vadd.f32 %v600, %v75
    %v626 = vadd.f32 %v601, %v75
    %v627 = vadd.f32 %v602, %v80
    %v628 = vadd.f32 %v603, %v80
    %v629 = vmul.f32 %v625, %v625
    %v630 = vmul.f32 %v626, %v626
    %v631 = vmul.f32 %v627, %v627
    %v632 = vmul.f32 %v628, %v628
    %v633 = vmul.f32 %v605, %v605
    %v634 = vmul.f32 %v606, %v606
    %v635 = vmul.f32 %v607, %v607
    %v636 = vmul.f32 %v608, %v608
    %v637 = vadd.f32 %v629, %v633
    %v638 = vadd.f32 %v630, %v634
    %v639 = vadd.f32 %v631, %v635
    %v640 = vadd.f32 %v632, %v636
    %v641 = vrcp.pop %v637
    %v642 = vrcp.pop %v638
    %v643 = vrcp.pop %v639
    %v644 = vrcp.pop %v640
    %v645 = vmul.f32 %v613, %v625
    %v646 = vmul.f32 %v614, %v626
    %v647 = vmul.f32 %v615, %v627
    %v648 = vmul.f32 %v616, %v628
    %v649 = vmul.f32 %v621, %v605
    %v650 = vmul.f32 %v622, %v606
    %v651 = vmul.f32 %v623, %v607
    %v652 = vmul.f32 %v624, %v608
    %v653 = vadd.f32 %v645, %v649
    %v654 = vadd.f32 %v646, %v650
    %v655 = vadd.f32 %v647, %v651
    %v656 = vadd.f32 %v648, %v652
    %v657 = vmul.f32 %v653, %v641
    %v658 = vmul.f32 %v654, %v642
    %v659 = vmul.f32 %v655, %v643
    %v660 = vmul.f32 %v656, %v644
    %v661 = vmul.f32 %v621, %v625
    %v662 = vmul.f32 %v622, %v626
    %v663 = vmul.f32 %v623, %v627
    %v664 = vmul.f32 %v624, %v628
    %v665 = vmul.f32 %v613, %v605
    %v666 = vmul.f32 %v614, %v606
    %v667 = vmul.f32 %v615, %v607
    %v668 = vmul.f32 %v616, %v608
    %v669 = vsub.f32 %v661, %v665
    %v670 = vsub.f32 %v662, %v666
    %v671 = vsub.f32 %v663, %v667
    %v672 = vsub.f32 %v664, %v668
    %v673 = vmul.f32 %v669, %v641
    %v674 = vmul.f32 %v670, %v642
    %v675 = vmul.f32 %v671, %v643
    %v676 = vmul.f32 %v672, %v644
    %v677 = vpack.c.bf16 %v659, %v657
    %v678 = vpack.c.bf16 %v660, %v658
    %v679 = vld [vmem:[%s4] sm:$0xff]
    %v680 = vld [vmem:[%s4 + $0x8] sm:$0xff]
    %v681 = vld [vmem:[%s4 + $0x10] sm:$0xff]
    %v682 = vld [vmem:[%s4 + $0x18] sm:$0xff]
    %v683 = vld [vmem:[%s4 + $0x20] sm:$0xff]
    %v684 = vld [vmem:[%s4 + $0x28] sm:$0xff]
    %v685 = vld [vmem:[%s4 + $0x30] sm:$0xff]
    %v686 = vld [vmem:[%s4 + $0x38] sm:$0xff]
    %v687 = vld [vmem:[%s4 + $0x40] sm:$0xff]
    %v688 = vld [vmem:[%s4 + $0x48] sm:$0xff]
    %v689 = vld [vmem:[%s4 + $0x50] sm:$0xff]
    %v690 = vld [vmem:[%s4 + $0x58] sm:$0xff]
    %v691 = vld [vmem:[%s4 + $0x60] sm:$0xff]
    %v692 = vld [vmem:[%s4 + $0x68] sm:$0xff]
    %v693 = vld [vmem:[%s4 + $0x70] sm:$0xff]
    %v694 = vld [vmem:[%s4 + $0x78] sm:$0xff]
    %v695 = vld [vmem:[%s4 + $0x80] sm:$0xff]
    %v696 = vld [vmem:[%s4 + $0x88] sm:$0xff]
    %v697 = vld [vmem:[%s4 + $0x90] sm:$0xff]
    %v698 = vld [vmem:[%s4 + $0x98] sm:$0xff]
    %v699 = vld [vmem:[%s4 + $0xa0] sm:$0xff]
    %v700 = vld [vmem:[%s4 + $0xa8] sm:$0xff]
    %v701 = vld [vmem:[%s4 + $0xb0] sm:$0xff]
    %v702 = vld [vmem:[%s4 + $0xb8] sm:$0xff]
    %v703 = vld [vmem:[%s4 + $0xc0] sm:$0xff]
    %v704 = vld [vmem:[%s4 + $0xc8] sm:$0xff]
    %v705 = vld [vmem:[%s4 + $0xd0] sm:$0xff]
    %v706 = vld [vmem:[%s4 + $0xd8] sm:$0xff]
    %v707 = vld [vmem:[%s4 + $0xe0] sm:$0xff]
    %v708 = vld [vmem:[%s4 + $0xe8] sm:$0xff]
    %v709 = vld [vmem:[%s4 + $0xf0] sm:$0xff]
    %v710 = vld [vmem:[%s4 + $0xf8] sm:$0xff]
    %v743 = vunpack.c.l.b16 %v679
    %v744 = vunpack.c.h.b16 %v679
    %v745 = vunpack.c.l.b16 %v680
    %v746 = vunpack.c.h.b16 %v680
    %v747 = vunpack.c.l.b16 %v681
    %v748 = vunpack.c.h.b16 %v681
    %v749 = vunpack.c.l.b16 %v682
    %v750 = vunpack.c.h.b16 %v682
    %v751 = vunpack.c.l.b16 %v683
    %v752 = vunpack.c.h.b16 %v683
    %v753 = vunpack.c.l.b16 %v684
    %v754 = vunpack.c.h.b16 %v684
    %v755 = vunpack.c.l.b16 %v685
    %v756 = vunpack.c.h.b16 %v685
    %v757 = vunpack.c.l.b16 %v686
    %v758 = vunpack.c.h.b16 %v686
    %v759 = vunpack.c.l.b16 %v687
    %v760 = vunpack.c.h.b16 %v687
    %v761 = vunpack.c.l.b16 %v688
    %v762 = vunpack.c.h.b16 %v688
    %v763 = vunpack.c.l.b16 %v689
    %v764 = vunpack.c.h.b16 %v689
    %v765 = vunpack.c.l.b16 %v690
    %v766 = vunpack.c.h.b16 %v690
    %v767 = vunpack.c.l.b16 %v691
    %v768 = vunpack.c.h.b16 %v691
    %v769 = vunpack.c.l.b16 %v692
    %v770 = vunpack.c.h.b16 %v692
    %v771 = vunpack.c.l.b16 %v693
    %v772 = vunpack.c.h.b16 %v693
    %v773 = vunpack.c.l.b16 %v694
    %v774 = vunpack.c.h.b16 %v694
    %v775 = vunpack.c.l.b16 %v695
    %v776 = vunpack.c.h.b16 %v695
    %v777 = vunpack.c.l.b16 %v696
    %v778 = vunpack.c.h.b16 %v696
    %v779 = vunpack.c.l.b16 %v697
    %v780 = vunpack.c.h.b16 %v697
    %v781 = vunpack.c.l.b16 %v698
    %v782 = vunpack.c.h.b16 %v698
    %v783 = vunpack.c.l.b16 %v699
    %v784 = vunpack.c.h.b16 %v699
    %v785 = vunpack.c.l.b16 %v700
    %v786 = vunpack.c.h.b16 %v700
    %v787 = vunpack.c.l.b16 %v701
    %v788 = vunpack.c.h.b16 %v701
    %v789 = vunpack.c.l.b16 %v702
    %v790 = vunpack.c.h.b16 %v702
    %v791 = vunpack.c.l.b16 %v703
    %v792 = vunpack.c.h.b16 %v703
    %v793 = vunpack.c.l.b16 %v704
    %v794 = vunpack.c.h.b16 %v704
    %v795 = vunpack.c.l.b16 %v705
    %v796 = vunpack.c.h.b16 %v705
    %v797 = vunpack.c.l.b16 %v706
    %v798 = vunpack.c.h.b16 %v706
    %v799 = vunpack.c.l.b16 %v707
    %v800 = vunpack.c.h.b16 %v707
    %v801 = vunpack.c.l.b16 %v708
    %v802 = vunpack.c.h.b16 %v708
    %v803 = vunpack.c.l.b16 %v709
    %v804 = vunpack.c.h.b16 %v709
    %v805 = vunpack.c.l.b16 %v710
    %v806 = vunpack.c.h.b16 %v710
    %v807 = vpack.c.b16 %v745, %v743
    %v808 = vpack.c.b16 %v746, %v744
    %v809 = vpack.c.b16 %v749, %v747
    %v810 = vpack.c.b16 %v750, %v748
    %v811 = vpack.c.b16 %v753, %v751
    %v812 = vpack.c.b16 %v754, %v752
    %v813 = vpack.c.b16 %v757, %v755
    %v814 = vpack.c.b16 %v758, %v756
    %v815 = vpack.c.b16 %v761, %v759
    %v816 = vpack.c.b16 %v762, %v760
    %v817 = vpack.c.b16 %v765, %v763
    %v818 = vpack.c.b16 %v766, %v764
    %v819 = vpack.c.b16 %v769, %v767
    %v820 = vpack.c.b16 %v770, %v768
    %v821 = vpack.c.b16 %v773, %v771
    %v822 = vpack.c.b16 %v774, %v772
    %v823 = vpack.c.b16 %v777, %v775
    %v824 = vpack.c.b16 %v778, %v776
    %v825 = vpack.c.b16 %v781, %v779
    %v826 = vpack.c.b16 %v782, %v780
    %v827 = vpack.c.b16 %v785, %v783
    %v828 = vpack.c.b16 %v786, %v784
    %v829 = vpack.c.b16 %v789, %v787
    %v830 = vpack.c.b16 %v790, %v788
    %v831 = vpack.c.b16 %v793, %v791
    %v832 = vpack.c.b16 %v794, %v792
    %v833 = vpack.c.b16 %v797, %v795
    %v834 = vpack.c.b16 %v798, %v796
    %v835 = vpack.c.b16 %v801, %v799
    %v836 = vpack.c.b16 %v802, %v800
    %v837 = vpack.c.b16 %v805, %v803
    %v838 = vpack.c.b16 %v806, %v804
    %871 = vmatpush.bf16.msra.mxu0 %v821
    %872 = vmatpush.bf16.msra.mxu0 %v819
    %873 = vmatpush.bf16.msra.mxu0 %v817
    %874 = vmatpush.bf16.msra.mxu0 %v815
    %875 = vmatpush.bf16.msra.mxu0 %v813
    %876 = vmatpush.bf16.msra.mxu0 %v811
    %877 = vmatpush.bf16.msra.mxu0 %v809
    %878 = vmatpush.bf16.msra.mxu0 %v807
    %879 = vmatmul.bf16.gmra.mxu0 %v677
    %v880 = vpop.f32.mrf.mxu0
    %v881 = vadd.f32 0.0, %v880
    %v882 = vpop.f32.mrf.mxu0
    %v883 = vadd.f32 0.0, %v882
    %884 = vdwg.mxu0
    %885 = vmatpush.bf16.msra.mxu0 %v837
    %886 = vmatpush.bf16.msra.mxu0 %v835
    %887 = vmatpush.bf16.msra.mxu0 %v833
    %888 = vmatpush.bf16.msra.mxu0 %v831
    %889 = vmatpush.bf16.msra.mxu0 %v829
    %890 = vmatpush.bf16.msra.mxu0 %v827
    %891 = vmatpush.bf16.msra.mxu0 %v825
    %892 = vmatpush.bf16.msra.mxu0 %v823
    %893 = vmatmul.bf16.gmra.mxu0 %v678
    %v894 = vpop.f32.mrf.mxu0
    %v895 = vadd.f32 %v881, %v894
    %v896 = vpop.f32.mrf.mxu0
    %v897 = vadd.f32 %v883, %v896
    %898 = vdwg.mxu0
    %899 = vmatpush.bf16.msra.mxu0 %v822
    %900 = vmatpush.bf16.msra.mxu0 %v820
    %901 = vmatpush.bf16.msra.mxu0 %v818
    %902 = vmatpush.bf16.msra.mxu0 %v816
    %903 = vmatpush.bf16.msra.mxu0 %v814
    %904 = vmatpush.bf16.msra.mxu0 %v812
    %905 = vmatpush.bf16.msra.mxu0 %v810
    %906 = vmatpush.bf16.msra.mxu0 %v808
    %907 = vmatmul.bf16.gmra.mxu0 %v677
    %v908 = vpop.f32.mrf.mxu0
    %v909 = vadd.f32 0.0, %v908
    %v910 = vpop.f32.mrf.mxu0
    %v911 = vadd.f32 0.0, %v910
    %912 = vdwg.mxu0
    %913 = vmatpush.bf16.msra.mxu0 %v838
    %914 = vmatpush.bf16.msra.mxu0 %v836
    %915 = vmatpush.bf16.msra.mxu0 %v834
    %916 = vmatpush.bf16.msra.mxu0 %v832
    %917 = vmatpush.bf16.msra.mxu0 %v830
    %918 = vmatpush.bf16.msra.mxu0 %v828
    %919 = vmatpush.bf16.msra.mxu0 %v826
    %920 = vmatpush.bf16.msra.mxu0 %v824
    %921 = vmatmul.bf16.gmra.mxu0 %v678
    %v922 = vpop.f32.mrf.mxu0
    %v923 = vadd.f32 %v909, %v922
    %v924 = vpop.f32.mrf.mxu0
    %v925 = vadd.f32 %v911, %v924
    %926 = vdwg.mxu0
    %v927 = vpack.c.bf16 %v675, %v673
    %v928 = vpack.c.bf16 %v676, %v674
    %v929 = vld [vmem:[#allocation6] sm:$0xff]
    %v930 = vld [vmem:[#allocation6 + $0x8] sm:$0xff]
    %v931 = vld [vmem:[#allocation6 + $0x10] sm:$0xff]
    %v932 = vld [vmem:[#allocation6 + $0x18] sm:$0xff]
    %v933 = vld [vmem:[#allocation6 + $0x20] sm:$0xff]
    %v934 = vld [vmem:[#allocation6 + $0x28] sm:$0xff]
    %v935 = vld [vmem:[#allocation6 + $0x30] sm:$0xff]
    %v936 = vld [vmem:[#allocation6 + $0x38] sm:$0xff]
    %v937 = vld [vmem:[#allocation6 + $0x40] sm:$0xff]
    %v938 = vld [vmem:[#allocation6 + $0x48] sm:$0xff]
    %v939 = vld [vmem:[#allocation6 + $0x50] sm:$0xff]
    %v940 = vld [vmem:[#allocation6 + $0x58] sm:$0xff]
    %v941 = vld [vmem:[#allocation6 + $0x60] sm:$0xff]
    %v942 = vld [vmem:[#allocation6 + $0x68] sm:$0xff]
    %v943 = vld [vmem:[#allocation6 + $0x70] sm:$0xff]
    %v944 = vld [vmem:[#allocation6 + $0x78] sm:$0xff]
    %v945 = vld [vmem:[#allocation6 + $0x80] sm:$0xff]
    %v946 = vld [vmem:[#allocation6 + $0x88] sm:$0xff]
    %v947 = vld [vmem:[#allocation6 + $0x90] sm:$0xff]
    %v948 = vld [vmem:[#allocation6 + $0x98] sm:$0xff]
    %v949 = vld [vmem:[#allocation6 + $0xa0] sm:$0xff]
    %v950 = vld [vmem:[#allocation6 + $0xa8] sm:$0xff]
    %v951 = vld [vmem:[#allocation6 + $0xb0] sm:$0xff]
    %v952 = vld [vmem:[#allocation6 + $0xb8] sm:$0xff]
    %v953 = vld [vmem:[#allocation6 + $0xc0] sm:$0xff]
    %v954 = vld [vmem:[#allocation6 + $0xc8] sm:$0xff]
    %v955 = vld [vmem:[#allocation6 + $0xd0] sm:$0xff]
    %v956 = vld [vmem:[#allocation6 + $0xd8] sm:$0xff]
    %v957 = vld [vmem:[#allocation6 + $0xe0] sm:$0xff]
    %v958 = vld [vmem:[#allocation6 + $0xe8] sm:$0xff]
    %v959 = vld [vmem:[#allocation6 + $0xf0] sm:$0xff]
    %v960 = vld [vmem:[#allocation6 + $0xf8] sm:$0xff]
    %v993 = vunpack.c.l.b16 %v929
    %v994 = vunpack.c.h.b16 %v929
    %v995 = vunpack.c.l.b16 %v930
    %v996 = vunpack.c.h.b16 %v930
    %v997 = vunpack.c.l.b16 %v931
    %v998 = vunpack.c.h.b16 %v931
    %v999 = vunpack.c.l.b16 %v932
    %v1000 = vunpack.c.h.b16 %v932
    %v1001 = vunpack.c.l.b16 %v933
    %v1002 = vunpack.c.h.b16 %v933
    %v1003 = vunpack.c.l.b16 %v934
    %v1004 = vunpack.c.h.b16 %v934
    %v1005 = vunpack.c.l.b16 %v935
    %v1006 = vunpack.c.h.b16 %v935
    %v1007 = vunpack.c.l.b16 %v936
    %v1008 = vunpack.c.h.b16 %v936
    %v1009 = vunpack.c.l.b16 %v937
    %v1010 = vunpack.c.h.b16 %v937
    %v1011 = vunpack.c.l.b16 %v938
    %v1012 = vunpack.c.h.b16 %v938
    %v1013 = vunpack.c.l.b16 %v939
    %v1014 = vunpack.c.h.b16 %v939
    %v1015 = vunpack.c.l.b16 %v940
    %v1016 = vunpack.c.h.b16 %v940
    %v1017 = vunpack.c.l.b16 %v941
    %v1018 = vunpack.c.h.b16 %v941
    %v1019 = vunpack.c.l.b16 %v942
    %v1020 = vunpack.c.h.b16 %v942
    %v1021 = vunpack.c.l.b16 %v943
    %v1022 = vunpack.c.h.b16 %v943
    %v1023 = vunpack.c.l.b16 %v944
    %v1024 = vunpack.c.h.b16 %v944
    %v1025 = vunpack.c.l.b16 %v945
    %v1026 = vunpack.c.h.b16 %v945
    %v1027 = vunpack.c.l.b16 %v946
    %v1028 = vunpack.c.h.b16 %v946
    %v1029 = vunpack.c.l.b16 %v947
    %v1030 = vunpack.c.h.b16 %v947
    %v1031 = vunpack.c.l.b16 %v948
    %v1032 = vunpack.c.h.b16 %v948
    %v1033 = vunpack.c.l.b16 %v949
    %v1034 = vunpack.c.h.b16 %v949
    %v1035 = vunpack.c.l.b16 %v950
    %v1036 = vunpack.c.h.b16 %v950
    %v1037 = vunpack.c.l.b16 %v951
    %v1038 = vunpack.c.h.b16 %v951
    %v1039 = vunpack.c.l.b16 %v952
    %v1040 = vunpack.c.h.b16 %v952
    %v1041 = vunpack.c.l.b16 %v953
    %v1042 = vunpack.c.h.b16 %v953
    %v1043 = vunpack.c.l.b16 %v954
    %v1044 = vunpack.c.h.b16 %v954
    %v1045 = vunpack.c.l.b16 %v955
    %v1046 = vunpack.c.h.b16 %v955
    %v1047 = vunpack.c.l.b16 %v956
    %v1048 = vunpack.c.h.b16 %v956
    %v1049 = vunpack.c.l.b16 %v957
    %v1050 = vunpack.c.h.b16 %v957
    %v1051 = vunpack.c.l.b16 %v958
    %v1052 = vunpack.c.h.b16 %v958
    %v1053 = vunpack.c.l.b16 %v959
    %v1054 = vunpack.c.h.b16 %v959
    %v1055 = vunpack.c.l.b16 %v960
    %v1056 = vunpack.c.h.b16 %v960
    %v1057 = vpack.c.b16 %v995, %v993
    %v1058 = vpack.c.b16 %v996, %v994
    %v1059 = vpack.c.b16 %v999, %v997
    %v1060 = vpack.c.b16 %v1000, %v998
    %v1061 = vpack.c.b16 %v1003, %v1001
    %v1062 = vpack.c.b16 %v1004, %v1002
    %v1063 = vpack.c.b16 %v1007, %v1005
    %v1064 = vpack.c.b16 %v1008, %v1006
    %v1065 = vpack.c.b16 %v1011, %v1009
    %v1066 = vpack.c.b16 %v1012, %v1010
    %v1067 = vpack.c.b16 %v1015, %v1013
    %v1068 = vpack.c.b16 %v1016, %v1014
    %v1069 = vpack.c.b16 %v1019, %v1017
    %v1070 = vpack.c.b16 %v1020, %v1018
    %v1071 = vpack.c.b16 %v1023, %v1021
    %v1072 = vpack.c.b16 %v1024, %v1022
    %v1073 = vpack.c.b16 %v1027, %v1025
    %v1074 = vpack.c.b16 %v1028, %v1026
    %v1075 = vpack.c.b16 %v1031, %v1029
    %v1076 = vpack.c.b16 %v1032, %v1030
    %v1077 = vpack.c.b16 %v1035, %v1033
    %v1078 = vpack.c.b16 %v1036, %v1034
    %v1079 = vpack.c.b16 %v1039, %v1037
    %v1080 = vpack.c.b16 %v1040, %v1038
    %v1081 = vpack.c.b16 %v1043, %v1041
    %v1082 = vpack.c.b16 %v1044, %v1042
    %v1083 = vpack.c.b16 %v1047, %v1045
    %v1084 = vpack.c.b16 %v1048, %v1046
    %v1085 = vpack.c.b16 %v1051, %v1049
    %v1086 = vpack.c.b16 %v1052, %v1050
    %v1087 = vpack.c.b16 %v1055, %v1053
    %v1088 = vpack.c.b16 %v1056, %v1054
    %1121 = vmatpush.bf16.msra.mxu0 %v1071
    %1122 = vmatpush.bf16.msra.mxu0 %v1069
    %1123 = vmatpush.bf16.msra.mxu0 %v1067
    %1124 = vmatpush.bf16.msra.mxu0 %v1065
    %1125 = vmatpush.bf16.msra.mxu0 %v1063
    %1126 = vmatpush.bf16.msra.mxu0 %v1061
    %1127 = vmatpush.bf16.msra.mxu0 %v1059
    %1128 = vmatpush.bf16.msra.mxu0 %v1057
    %1129 = vmatmul.bf16.gmra.mxu0 %v927
    %v1130 = vpop.f32.mrf.mxu0
    %v1131 = vadd.f32 0.0, %v1130
    %v1132 = vpop.f32.mrf.mxu0
    %v1133 = vadd.f32 0.0, %v1132
    %1134 = vdwg.mxu0
    %1135 = vmatpush.bf16.msra.mxu0 %v1087
    %1136 = vmatpush.bf16.msra.mxu0 %v1085
    %1137 = vmatpush.bf16.msra.mxu0 %v1083
    %1138 = vmatpush.bf16.msra.mxu0 %v1081
    %1139 = vmatpush.bf16.msra.mxu0 %v1079
    %1140 = vmatpush.bf16.msra.mxu0 %v1077
    %1141 = vmatpush.bf16.msra.mxu0 %v1075
    %1142 = vmatpush.bf16.msra.mxu0 %v1073
    %1143 = vmatmul.bf16.gmra.mxu0 %v928
    %v1144 = vpop.f32.mrf.mxu0
    %v1145 = vadd.f32 %v1131, %v1144
    %v1146 = vpop.f32.mrf.mxu0
    %v1147 = vadd.f32 %v1133, %v1146
    %1148 = vdwg.mxu0
    %1149 = vmatpush.bf16.msra.mxu0 %v1072
    %1150 = vmatpush.bf16.msra.mxu0 %v1070
    %1151 = vmatpush.bf16.msra.mxu0 %v1068
    %1152 = vmatpush.bf16.msra.mxu0 %v1066
    %1153 = vmatpush.bf16.msra.mxu0 %v1064
    %1154 = vmatpush.bf16.msra.mxu0 %v1062
    %1155 = vmatpush.bf16.msra.mxu0 %v1060
    %1156 = vmatpush.bf16.msra.mxu0 %v1058
    %1157 = vmatmul.bf16.gmra.mxu0 %v927
    %v1158 = vpop.f32.mrf.mxu0
    %v1159 = vadd.f32 0.0, %v1158
    %v1160 = vpop.f32.mrf.mxu0
    %v1161 = vadd.f32 0.0, %v1160
    %1162 = vdwg.mxu0
    %1163 = vmatpush.bf16.msra.mxu0 %v1088
    %1164 = vmatpush.bf16.msra.mxu0 %v1086
    %1165 = vmatpush.bf16.msra.mxu0 %v1084
    %1166 = vmatpush.bf16.msra.mxu0 %v1082
    %1167 = vmatpush.bf16.msra.mxu0 %v1080
    %1168 = vmatpush.bf16.msra.mxu0 %v1078
    %1169 = vmatpush.bf16.msra.mxu0 %v1076
    %1170 = vmatpush.bf16.msra.mxu0 %v1074
    %1171 = vmatmul.bf16.gmra.mxu0 %v928
    %v1172 = vpop.f32.mrf.mxu0
    %v1173 = vadd.f32 %v1159, %v1172
    %v1174 = vpop.f32.mrf.mxu0
    %v1175 = vadd.f32 %v1161, %v1174
    %1176 = vdwg.mxu0
    %v1177 = vsub.f32 %v895, %v1145
    %v1178 = vsub.f32 %v923, %v1173
    %v1179 = vsub.f32 %v897, %v1147
    %v1180 = vsub.f32 %v925, %v1175
    %1181 = vst [vmem:[%s6] sm:$0xff] %v1177
    %1182 = vst [vmem:[%s6 + $0x8] sm:$0xff] %v1178
    %1183 = vst [vmem:[%s6 + $0x10] sm:$0xff] %v1179
    %1184 = vst [vmem:[%s6 + $0x18] sm:$0xff] %v1180
    // Predicated region
    $region38: #{ref_deconv_packed.1} parent=1 // pred_check
      _
    $region39: #{ref_deconv_packed.1} parent=1 // pred_check_branch
      %1186 = sbr.rel (0) target = $region41
    $region40: #{ref_deconv_packed.1} parent=1 // pred_region
      _
    $region41: #{ref_deconv_packed.1} parent=1 // pred_fallthru
      _
    // Predicated region
    $region42: #{ref_deconv_packed.1} parent=1 // pred_check
      _
    $region43: #{ref_deconv_packed.1} parent=1 // pred_check_branch
      %1188 = sbr.rel (0) target = $region45
    $region44: #{ref_deconv_packed.1} parent=1 // pred_region
      _
    $region45: #{ref_deconv_packed.1} parent=1 // pred_fallthru
      _
    %1189 = vsyncpa [#allocation3], 1
    %1190 = vsyncpa [#allocation5], 1

</llo_original>
